<compile_context>
chip_gen: v5e
topology: v5e:2x2
jax: 0.10.0
libtpu: 0.0.40
codegen_flags: <defaults>
</compile_context>

<pallas_src>
import functools

import jax
import jax.numpy as jnp
from jax.experimental import pallas as pl
from jax.experimental.pallas import tpu as pltpu

LATENT_DIM = 3
NUM_CLASSES = 10
EMB_DIM = 16
HIDDEN = 128
OUT = 28 * 28          # 784
OUT_PAD = 7 * 128      # 896, lane-dense padded output width
MAX_TB = 512           # batch tile (rows per grid step)


def _round_up(x, m):
    return ((x + m - 1) // m) * m


def _decoder_kernel(latent_ref, label_ref,
                    w_h_lat_ref, class_tbl_ref, b_h_ref,
                    w_out_ref, b_out_ref,
                    o_ref):
    tb = latent_ref.shape[0]

    # one-hot(label, 10), built from an iota over the class axis.
    labels = label_ref[...]                                          # (TB, 1) int32
    classes = jax.lax.broadcasted_iota(jnp.int32, (tb, NUM_CLASSES), 1)
    one_hot = (classes == labels).astype(class_tbl_ref.dtype)        # (TB, 10) bf16

    # hidden = relu(latent @ W_h_lat + one_hot @ class_table + b_h)
    # (class_table already folds relu(W_emb + b_emb) @ W_h_emb per class.)
    latent_lo = latent_ref[...].astype(w_h_lat_ref.dtype)
    hidden = (jnp.dot(latent_lo, w_h_lat_ref[...],
                      preferred_element_type=jnp.float32)
              + jnp.dot(one_hot, class_tbl_ref[...],
                        preferred_element_type=jnp.float32)
              + b_h_ref[...])
    hidden = jnp.maximum(hidden, 0.0)                                # (TB, 128) f32

    # output = sigmoid(hidden @ W_out + b_out), lane-padded to 896 columns.
    logits = jnp.dot(hidden.astype(w_out_ref.dtype), w_out_ref[...],
                     preferred_element_type=jnp.float32) + b_out_ref[...]
    o_ref[...] = jax.nn.sigmoid(logits)                              # (TB, 896)


def decoder_forward(latent, label, params):
    """latent: (B, 3) f32, label: (B,) int -> (B, 1, 28, 28) f32."""
    B = latent.shape[0]

    # Batch tiling: TB is a multiple of 8 (sublane) and caps at MAX_TB.
    TB = min(MAX_TB, _round_up(B, 8))
    B_pad = _round_up(B, TB)
    num_tiles = pl.cdiv(B_pad, TB)

    latent_p = jnp.zeros((B_pad, LATENT_DIM), jnp.float32).at[:B].set(
        latent.astype(jnp.float32))
    label_p = jnp.zeros((B_pad, 1), jnp.int32).at[:B, 0].set(
        label.astype(jnp.int32))

    w_h_lat = params["w_h_lat"]        # (3, 128)   bf16
    class_tbl = params["class_table"]  # (10, 128)  bf16
    b_h = params["b_h"]                # (1, 128)   f32
    w_out = params["w_out"]            # (128, 896) bf16 (cols >=784 are zero)
    b_out = params["b_out"]            # (1, 896)   f32  (cols >=784 are zero)

    weight_bytes = (w_h_lat.size * 2 + class_tbl.size * 2 + b_h.size * 4
                    + w_out.size * 2 + b_out.size * 4)
    cost = pl.CostEstimate(
        flops=2 * B_pad * (LATENT_DIM * HIDDEN + NUM_CLASSES * HIDDEN
                           + HIDDEN * OUT_PAD),
        transcendentals=B_pad * OUT_PAD,
        bytes_accessed=weight_bytes + B_pad * (LATENT_DIM * 4 + 4 + OUT_PAD * 4),
    )

    grid_spec = pltpu.PrefetchScalarGridSpec(
        num_scalar_prefetch=0,
        grid=(num_tiles,),
        in_specs=[
            pl.BlockSpec((TB, LATENT_DIM), lambda i: (i, 0)),      # latent tile
            pl.BlockSpec((TB, 1), lambda i: (i, 0)),               # label tile
            pl.BlockSpec((LATENT_DIM, HIDDEN), lambda i: (0, 0)),  # resident weights
            pl.BlockSpec((NUM_CLASSES, HIDDEN), lambda i: (0, 0)),
            pl.BlockSpec((1, HIDDEN), lambda i: (0, 0)),
            pl.BlockSpec((HIDDEN, OUT_PAD), lambda i: (0, 0)),
            pl.BlockSpec((1, OUT_PAD), lambda i: (0, 0)),
        ],
        out_specs=pl.BlockSpec((TB, OUT_PAD), lambda i: (i, 0)),
    )

    out_padded = pl.pallas_call(
        _decoder_kernel,
        out_shape=jax.ShapeDtypeStruct((B_pad, OUT_PAD), jnp.float32),
        grid_spec=grid_spec,
        compiler_params=pltpu.CompilerParams(
            dimension_semantics=("parallel",)),
        cost_estimate=cost,
    )(latent_p, label_p, w_h_lat, class_tbl, b_h, w_out, b_out)

    # Drop batch / lane padding, then reshape to NCHW like .view(-1, 1, 28, 28).
    return out_padded[:B, :OUT].reshape(B, 1, 28, 28)


def init_params(key):
    """Init mirroring PyTorch nn.Linear defaults (U[-1/sqrt(fan_in), +...]).

    Weights are stored transposed relative to PyTorch, i.e. shape (in, out),
    so the kernel computes x @ W + b.  The embedding branch is folded into a
    per-class hidden table; matmul weights are cast to bf16 for the MXU."""
    k1, k2, k3, k4, k5, k6 = jax.random.split(key, 6)

    def lin(kw, kb, fan_in, fan_out):
        bound = 1.0 / jnp.sqrt(jnp.float32(fan_in))
        w = jax.random.uniform(kw, (fan_in, fan_out), jnp.float32, -bound, bound)
        b = jax.random.uniform(kb, (1, fan_out), jnp.float32, -bound, bound)
        return w, b

    w_emb, b_emb = lin(k1, k2, NUM_CLASSES, EMB_DIM)      # (10,16), (1,16)
    w_h, b_h = lin(k3, k4, LATENT_DIM + EMB_DIM, HIDDEN)  # (19,128), (1,128)
    w_out, b_out = lin(k5, k6, HIDDEN, OUT)               # (128,784), (1,784)

    # Fold: class_table[c] = relu(W_emb[c] + b_emb) @ W_h_emb   -> (10, 128)
    emb_per_class = jnp.maximum(w_emb + b_emb, 0.0)                  # (10, 16)
    class_table = emb_per_class @ w_h[LATENT_DIM:, :]                # (10, 128)

    # Lane-pad the output projection 784 -> 896 with zero columns.
    w_out_p = jnp.zeros((HIDDEN, OUT_PAD), jnp.float32).at[:, :OUT].set(w_out)
    b_out_p = jnp.zeros((1, OUT_PAD), jnp.float32).at[:, :OUT].set(b_out)

    return {
        "w_h_lat": w_h[:LATENT_DIM, :].astype(jnp.bfloat16),   # (3, 128)
        "class_table": class_table.astype(jnp.bfloat16),       # (10, 128)
        "b_h": b_h,                                            # (1, 128) f32
        "w_out": w_out_p.astype(jnp.bfloat16),                 # (128, 896)
        "b_out": b_out_p,                                      # (1, 896) f32
    }


if __name__ == "__main__":
    key = jax.random.PRNGKey(0)
    kp, kl, kc = jax.random.split(key, 3)

    B = 8
    params = init_params(kp)
    latent = jax.random.normal(kl, (B, LATENT_DIM), jnp.float32)
    label = jax.random.randint(kc, (B,), 0, NUM_CLASSES, jnp.int32)

    out = decoder_forward(latent, label, params)
    jax.block_until_ready(out)

    assert out.shape == (B, 1, 28, 28), out.shape
    assert out.dtype == jnp.float32
    assert bool(jnp.all((out > 0.0) & (out < 1.0)))
    assert bool(jnp.all(jnp.isfinite(out)))
    print("KERNEL_OK")
</pallas_src>

<mosaic_0001>
module attributes {stable_mosaic.version = 11 : i64} {
  func.func @_decoder_kernel(%arg0: i32, %arg1: memref<8x3xf32, #tpu.memory_space<vmem>>, %arg2: memref<8x1xi32, #tpu.memory_space<vmem>>, %arg3: memref<3x128xbf16, #tpu.memory_space<vmem>>, %arg4: memref<10x128xbf16, #tpu.memory_space<vmem>>, %arg5: memref<1x128xf32, #tpu.memory_space<vmem>>, %arg6: memref<128x896xbf16, #tpu.memory_space<vmem>>, %arg7: memref<1x896xf32, #tpu.memory_space<vmem>>, %arg8: memref<8x896xf32, #tpu.memory_space<vmem>>) attributes {dimension_semantics = [#tpu.dimension_semantics<parallel>], iteration_bounds = array<i64: 1>, scalar_prefetch = 0 : i64, scratch_operands = 0 : i64, tpu.core_type = #tpu.core_type<tc>, window_params = [{transform_indices = @transform_0, window_bounds = array<i64: 8, 3>}, {transform_indices = @transform_1, window_bounds = array<i64: 8, 1>}, {pipeline_mode = #tpu.pipeline_mode<synchronous>, transform_indices = @transform_2, window_bounds = array<i64: 3, 128>}, {pipeline_mode = #tpu.pipeline_mode<synchronous>, transform_indices = @transform_3, window_bounds = array<i64: 10, 128>}, {pipeline_mode = #tpu.pipeline_mode<synchronous>, transform_indices = @transform_4, window_bounds = array<i64: 1, 128>}, {pipeline_mode = #tpu.pipeline_mode<synchronous>, transform_indices = @transform_5, window_bounds = array<i64: 128, 896>}, {pipeline_mode = #tpu.pipeline_mode<synchronous>, transform_indices = @transform_6, window_bounds = array<i64: 1, 896>}, {transform_indices = @transform_7, window_bounds = array<i64: 8, 896>}]} {
    %c0 = arith.constant 0 : index
    %c0_0 = arith.constant 0 : index
    %0 = vector.load %arg2[%c0, %c0_0] : memref<8x1xi32, #tpu.memory_space<vmem>>, vector<8x1xi32>
    %1 = tpu.iota {dimensions = array<i32: 1>} : vector<8x10xi32>
    %2 = vector.broadcast %0 : vector<8x1xi32> to vector<8x10xi32>
    %3 = arith.cmpi eq, %1, %2 : vector<8x10xi32>
    %4 = arith.extui %3 : vector<8x10xi1> to vector<8x10xi32>
    %5 = arith.sitofp %4 : vector<8x10xi32> to vector<8x10xf32>
    %6 = arith.truncf %5 : vector<8x10xf32> to vector<8x10xbf16>
    %c0_1 = arith.constant 0 : index
    %c0_2 = arith.constant 0 : index
    %7 = vector.load %arg1[%c0_1, %c0_2] : memref<8x3xf32, #tpu.memory_space<vmem>>, vector<8x3xf32>
    %8 = arith.truncf %7 : vector<8x3xf32> to vector<8x3xbf16>
    %c0_3 = arith.constant 0 : index
    %c0_4 = arith.constant 0 : index
    %9 = vector.load %arg3[%c0_3, %c0_4] : memref<3x128xbf16, #tpu.memory_space<vmem>>, vector<3x128xbf16>
    %cst = arith.constant dense<0.000000e+00> : vector<8x128xf32>
    %10 = tpu.matmul %8, %9, %cst {dimension_numbers = #tpu.dot_dimension_numbers<[1], [0], [0], [1], [0, 0, 1, 1], [], []>} : vector<8x3xbf16>, vector<3x128xbf16>, vector<8x128xf32> -> vector<8x128xf32>
    %c0_5 = arith.constant 0 : index
    %c0_6 = arith.constant 0 : index
    %11 = vector.load %arg4[%c0_5, %c0_6] : memref<10x128xbf16, #tpu.memory_space<vmem>>, vector<10x128xbf16>
    %cst_7 = arith.constant dense<0.000000e+00> : vector<8x128xf32>
    %12 = tpu.matmul %6, %11, %cst_7 {dimension_numbers = #tpu.dot_dimension_numbers<[1], [0], [0], [1], [0, 0, 1, 1], [], []>} : vector<8x10xbf16>, vector<10x128xbf16>, vector<8x128xf32> -> vector<8x128xf32>
    %13 = arith.addf %10, %12 : vector<8x128xf32>
    %c0_8 = arith.constant 0 : index
    %c0_9 = arith.constant 0 : index
    %14 = vector.load %arg5[%c0_8, %c0_9] : memref<1x128xf32, #tpu.memory_space<vmem>>, vector<1x128xf32>
    %15 = vector.broadcast %14 : vector<1x128xf32> to vector<8x128xf32>
    %16 = arith.addf %13, %15 : vector<8x128xf32>
    %cst_10 = arith.constant 0.000000e+00 : f32
    %17 = vector.broadcast %cst_10 : f32 to vector<8x128xf32>
    %18 = arith.maximumf %16, %17 : vector<8x128xf32>
    %19 = arith.truncf %18 : vector<8x128xf32> to vector<8x128xbf16>
    %c0_11 = arith.constant 0 : index
    %c0_12 = arith.constant 0 : index
    %20 = vector.load %arg6[%c0_11, %c0_12] : memref<128x896xbf16, #tpu.memory_space<vmem>>, vector<128x896xbf16>
    %cst_13 = arith.constant dense<0.000000e+00> : vector<8x896xf32>
    %21 = tpu.matmul %19, %20, %cst_13 {dimension_numbers = #tpu.dot_dimension_numbers<[1], [0], [0], [1], [0, 0, 1, 1], [], []>} : vector<8x128xbf16>, vector<128x896xbf16>, vector<8x896xf32> -> vector<8x896xf32>
    %c0_14 = arith.constant 0 : index
    %c0_15 = arith.constant 0 : index
    %22 = vector.load %arg7[%c0_14, %c0_15] : memref<1x896xf32, #tpu.memory_space<vmem>>, vector<1x896xf32>
    %23 = vector.broadcast %22 : vector<1x896xf32> to vector<8x896xf32>
    %24 = arith.addf %21, %23 : vector<8x896xf32>
    %25 = arith.negf %24 : vector<8x896xf32>
    %26 = math.exp %25 : vector<8x896xf32>
    %cst_16 = arith.constant 1.000000e+00 : f32
    %27 = vector.broadcast %cst_16 : f32 to vector<8x896xf32>
    %28 = arith.addf %27, %26 : vector<8x896xf32>
    %29 = arith.divf %27, %28 : vector<8x896xf32>
    %c0_17 = arith.constant 0 : index
    %c0_18 = arith.constant 0 : index
    %30 = vector.load %arg8[%c0_17, %c0_18] : memref<8x896xf32, #tpu.memory_space<vmem>>, vector<8x896xf32>
    tpu.vector_store %arg8[%c0_17, %c0_18], %29 {strides = array<i32>} : memref<8x896xf32, #tpu.memory_space<vmem>>, vector<8x896xf32>,
    return
  }
  func.func @transform_0(%arg0: i32) -> (i32, i32) {
    %c0_i32 = arith.constant 0 : i32
    %c0_i32_0 = arith.constant 0 : i32
    return %arg0, %c0_i32 : i32, i32
  }
  func.func @transform_1(%arg0: i32) -> (i32, i32) {
    %c0_i32 = arith.constant 0 : i32
    %c0_i32_0 = arith.constant 0 : i32
    return %arg0, %c0_i32 : i32, i32
  }
  func.func @transform_2(%arg0: i32) -> (i32, i32) {
    %c0_i32 = arith.constant 0 : i32
    %c0_i32_0 = arith.constant 0 : i32
    %c0_i32_1 = arith.constant 0 : i32
    return %c0_i32, %c0_i32_0 : i32, i32
  }
  func.func @transform_3(%arg0: i32) -> (i32, i32) {
    %c0_i32 = arith.constant 0 : i32
    %c0_i32_0 = arith.constant 0 : i32
    %c0_i32_1 = arith.constant 0 : i32
    return %c0_i32, %c0_i32_0 : i32, i32
  }
  func.func @transform_4(%arg0: i32) -> (i32, i32) {
    %c0_i32 = arith.constant 0 : i32
    %c0_i32_0 = arith.constant 0 : i32
    %c0_i32_1 = arith.constant 0 : i32
    return %c0_i32, %c0_i32_0 : i32, i32
  }
  func.func @transform_5(%arg0: i32) -> (i32, i32) {
    %c0_i32 = arith.constant 0 : i32
    %c0_i32_0 = arith.constant 0 : i32
    %c0_i32_1 = arith.constant 0 : i32
    return %c0_i32, %c0_i32_0 : i32, i32
  }
  func.func @transform_6(%arg0: i32) -> (i32, i32) {
    %c0_i32 = arith.constant 0 : i32
    %c0_i32_0 = arith.constant 0 : i32
    %c0_i32_1 = arith.constant 0 : i32
    return %c0_i32, %c0_i32_0 : i32, i32
  }
  func.func @transform_7(%arg0: i32) -> (i32, i32) {
    %c0_i32 = arith.constant 0 : i32
    %c0_i32_0 = arith.constant 0 : i32
    return %arg0, %c0_i32 : i32, i32
  }
}

</mosaic_0001>

<llo_original>
// kernel: tpu_custom_call.1
$region0: #{tpu_custom_call.1}
  #allocation0 [shape = 'u32[]', space=smem, size = 0x4, offset = 0x4, fixed_abs, tag = 'smem constant byte address 0x4 - core index']
  #allocation1 [shape = 'u32[72,128]{1,0:T(1,128)}', space=vmem, size = 0x9000, scoped, tag = 'internal scratch']
  %s0 = inlined_call_operand.vmem [shape: f32[8,3], index: 0, kind: input, shape index: {}]
  %s1 = inlined_call_operand.vmem [shape: s32[8,1], index: 1, kind: input, shape index: {}]
  %s2 = inlined_call_operand.vmem [shape: bf16[3,128], index: 2, kind: input, shape index: {}]
  %s3 = inlined_call_operand.vmem [shape: bf16[10,128], index: 3, kind: input, shape index: {}]
  %s4 = inlined_call_operand.vmem [shape: f32[1,128], index: 4, kind: input, shape index: {}]
  %s5 = inlined_call_operand.hbm [shape: bf16[128,896], index: 5, kind: input, shape index: {}]
  %s6 = inlined_call_operand.vmem [shape: f32[1,896], index: 6, kind: input, shape index: {}]
  %s7 = inlined_call_operand.hbm [shape: f32[8,896], index: 7, kind: output, shape index: {}]
  %s8 = sld [smem:[#allocation0]]
  $region42: #{tpu_custom_call.1} parent=0
    _
  %s10 = ssub.s32 1, %s8
  %s11 = scalar_select 0, %s10, %s8
  $region1: #{tpu_custom_call.1} parent=0
    #allocation2 [shape = 'u8[229376]{0}', space=vmem, size = 0x38000, scoped, tag = 'input window, operand 5, single buffered']
    #allocation3 [shape = 's32[1]{0}', space=sflag, size = 0x4, scoped, tag = 'scoped memory for tpu_custom_call.1']
    #allocation4 [shape = 's32[1]{0}', space=sflag, size = 0x4, scoped, tag = 'scoped memory for tpu_custom_call.1']
    #allocation5 [shape = 'u8[28672]{0}', space=vmem, size = 0x7000, scoped, tag = 'output window, operand 0, single buffered']
    %12 = vsyncpa [#allocation3], 0
    %13 = vsyncpa [#allocation4], 0
    // Predicated region
    $region2: #{tpu_custom_call.1} parent=1 // pred_check
      _
    $region3: #{tpu_custom_call.1} parent=1 // pred_check_branch
      %15 = sbr.rel (0) target = $region5
    $region4: #{tpu_custom_call.1} parent=1 // pred_region
      _
    $region5: #{tpu_custom_call.1} parent=1 // pred_fallthru
      _
    // Predicated region
    $region6: #{tpu_custom_call.1} parent=1 // pred_check
      _
    $region7: #{tpu_custom_call.1} parent=1 // pred_check_branch
      %17 = sbr.rel (0) target = $region9
    $region8: #{tpu_custom_call.1} parent=1 // pred_region
      _
    $region9: #{tpu_custom_call.1} parent=1 // pred_fallthru
      _
    // Predicated region
    $region10: #{tpu_custom_call.1} parent=1 // pred_check
      _
    $region11: #{tpu_custom_call.1} parent=1 // pred_check_branch
      %19 = sbr.rel (0) target = $region13
    $region12: #{tpu_custom_call.1} parent=1 // pred_region
      _
    $region13: #{tpu_custom_call.1} parent=1 // pred_fallthru
      _
    // Predicated region
    $region14: #{tpu_custom_call.1} parent=1 // pred_check
      _
    $region15: #{tpu_custom_call.1} parent=1 // pred_check_branch
      %21 = sbr.rel (0) target = $region17
    $region16: #{tpu_custom_call.1} parent=1 // pred_region
      _
    $region17: #{tpu_custom_call.1} parent=1 // pred_fallthru
      _
    // Predicated region
    $region18: #{tpu_custom_call.1} parent=1 // pred_check
      _
    $region19: #{tpu_custom_call.1} parent=1 // pred_check_branch
      %23 = sbr.rel (0) target = $region21
    $region20: #{tpu_custom_call.1} parent=1 // pred_region
      _
    $region21: #{tpu_custom_call.1} parent=1 // pred_fallthru
      _
    // Predicated region
    $region22: #{tpu_custom_call.1} parent=1 // pred_check
      _
    $region23: #{tpu_custom_call.1} parent=1 // pred_check_branch
      %25 = sbr.rel (0) target = $region25
    $region24: #{tpu_custom_call.1} parent=1 // pred_region
      %27 = vsyncadd [#allocation3], 0
      %s28 = sshll.u32 %s5, 4
      %s29 = int_to_ptr.hbm [resolvable:$true] %s28
      %s30 = sshll.u32 [#allocation2], 4
      %s31 = int_to_ptr.vmem [resolvable:$true] %s30
      %36 = dma.hbm_to_vmem [thread:$0]  %s29, 7168, %s31, [#allocation3], 448, 448, 28
    $region25: #{tpu_custom_call.1} parent=1 // pred_fallthru
      _
    // Predicated region
    $region26: #{tpu_custom_call.1} parent=1 // pred_check
      _
    $region27: #{tpu_custom_call.1} parent=1 // pred_check_branch
      %38 = sbr.rel (0) target = $region29
    $region28: #{tpu_custom_call.1} parent=1 // pred_region
      _
    $region29: #{tpu_custom_call.1} parent=1 // pred_fallthru
      _
    // Predicated region
    $region30: #{tpu_custom_call.1} parent=1 // pred_check
      _
    $region31: #{tpu_custom_call.1} parent=1 // pred_check_branch
      %40 = sbr.rel (0) target = $region33
    $region32: #{tpu_custom_call.1} parent=1 // pred_region
      %42 = dma.done [#allocation3], 7168
    $region33: #{tpu_custom_call.1} parent=1 // pred_fallthru
      _
    %v44 = vld [vmem:[%s1] sm:$0xff]
    %v45 = vlaneseq
    %v46 = vand.u32 %v45, 127
    %47 = vset.pattern.permute.xlu0 0
    %48 = vperm.xlu0 %47, %v44
    %v49 = vpop.permute.xlu0 %48
    %vm50 = vcmp.eq.s32.totalorder %v46, %v49
    %v51 = vsel %vm50, 1, 0
    %v52 = vcvt.s32.f32 %v51
    %v53 = vpack.c.bf16 %v52, %v52
    %v54 = vld [vmem:[%s0] sm:$0xff]
    %v55 = vpack.c.bf16 %v54, %v54
    %v56 = vld [vmem:[%s2] sm:$0x3]
    %v57 = vld [vmem:[%s3] sm:$0xf]
    %v58 = vld [vmem:[%s3 + $0x4] sm:$0x1]
    %v61 = vunpack.c.l.b16 %v57
    %v62 = vunpack.c.l.b16 %v58
    %v63 = vpack.c.b16 %v62, %v61
    %vm64 = vcmask 80896
    %v66 = vsel %vm64, %v53, 0
    %vm68 = vcmask 1044480
    %v70 = vsel %vm68, %v63, 0
    %72 = vmatpush.bf16.msra.mxu0 0
    %73 = vmatpush.bf16.msra.mxu0 0
    %74 = vmatpush.bf16.msra.mxu0 0
    %75 = vmatpush.bf16.msra.mxu0 0
    %76 = vmatpush.bf16.msra.mxu0 0
    %77 = vmatpush.bf16.msra.mxu0 0
    %78 = vmatpush.bf16.msra.mxu0 0
    %79 = vmatpush.bf16.msra.mxu0 %v70
    %80 = vmatmul.bf16.gmra.mxu0 %v66
    %v81 = vpop.f32.mrf.mxu0
    %v82 = vadd.f32 0.0, %v81
    %v83 = vpop.f32.mrf.mxu0
    %84 = vdwg.mxu0
    %vm85 = vcmask 23552
    %v87 = vsel %vm85, %v55, 0
    %vm89 = vcmask 1040384
    %vm90 = vcmask 1041408
    %v91 = vsel %vm89, 4294967295, 65535
    %v92 = vsel %vm90, %v91, 0
    %v94 = vand.u32 %v56, %v92
    %96 = vmatpush.bf16.msra.mxu0 0
    %97 = vmatpush.bf16.msra.mxu0 0
    %98 = vmatpush.bf16.msra.mxu0 0
    %99 = vmatpush.bf16.msra.mxu0 0
    %100 = vmatpush.bf16.msra.mxu0 0
    %101 = vmatpush.bf16.msra.mxu0 0
    %102 = vmatpush.bf16.msra.mxu0 0
    %103 = vmatpush.bf16.msra.mxu0 %v94
    %104 = vmatmul.bf16.gmra.mxu0 %v87
    %v105 = vpop.f32.mrf.mxu0
    %v106 = vadd.f32 %v82, %v105
    %v107 = vpop.f32.mrf.mxu0
    %108 = vdwg.mxu0
    %v109 = vld [vmem:[%s4] sm:$0x1]
    %v111 = vperm.slane %v109, 0
    %v113 = vadd.f32 %v106, %v111
    %v114 = vmax.f32 %v113, 0.0
    %v115 = vpack.c.bf16 %v114, %v114
    %v116 = vld [vmem:[#allocation2] sm:$0xff]
    %v117 = vld [vmem:[#allocation2 + $0x8] sm:$0xff]
    %v118 = vld [vmem:[#allocation2 + $0x10] sm:$0xff]
    %v119 = vld [vmem:[#allocation2 + $0x18] sm:$0xf]
    %v120 = vld [vmem:[#allocation2 + $0x1c] sm:$0xff]
    %v121 = vld [vmem:[#allocation2 + $0x24] sm:$0xff]
    %v122 = vld [vmem:[#allocation2 + $0x2c] sm:$0xff]
    %v123 = vld [vmem:[#allocation2 + $0x34] sm:$0xf]
    %v124 = vld [vmem:[#allocation2 + $0x38] sm:$0xff]
    %v125 = vld [vmem:[#allocation2 + $0x40] sm:$0xff]
    %v126 = vld [vmem:[#allocation2 + $0x48] sm:$0xff]
    %v127 = vld [vmem:[#allocation2 + $0x50] sm:$0xf]
    %v128 = vld [vmem:[#allocation2 + $0x54] sm:$0xff]
    %v129 = vld [vmem:[#allocation2 + $0x5c] sm:$0xff]
    %v130 = vld [vmem:[#allocation2 + $0x64] sm:$0xff]
    %v131 = vld [vmem:[#allocation2 + $0x6c] sm:$0xf]
    %v132 = vld [vmem:[#allocation2 + $0x70] sm:$0xff]
    %v133 = vld [vmem:[#allocation2 + $0x78] sm:$0xff]
    %v134 = vld [vmem:[#allocation2 + $0x80] sm:$0xff]
    %v135 = vld [vmem:[#allocation2 + $0x88] sm:$0xf]
    %v136 = vld [vmem:[#allocation2 + $0x8c] sm:$0xff]
    %v137 = vld [vmem:[#allocation2 + $0x94] sm:$0xff]
    %v138 = vld [vmem:[#allocation2 + $0x9c] sm:$0xff]
    %v139 = vld [vmem:[#allocation2 + $0xa4] sm:$0xf]
    %v140 = vld [vmem:[#allocation2 + $0xa8] sm:$0xff]
    %v141 = vld [vmem:[#allocation2 + $0xb0] sm:$0xff]
    %v142 = vld [vmem:[#allocation2 + $0xb8] sm:$0xff]
    %v143 = vld [vmem:[#allocation2 + $0xc0] sm:$0xf]
    %v144 = vld [vmem:[#allocation2 + $0xc4] sm:$0xff]
    %v145 = vld [vmem:[#allocation2 + $0xcc] sm:$0xff]
    %v146 = vld [vmem:[#allocation2 + $0xd4] sm:$0xff]
    %v147 = vld [vmem:[#allocation2 + $0xdc] sm:$0xf]
    %v148 = vld [vmem:[#allocation2 + $0xe0] sm:$0xff]
    %v149 = vld [vmem:[#allocation2 + $0xe8] sm:$0xff]
    %v150 = vld [vmem:[#allocation2 + $0xf0] sm:$0xff]
    %v151 = vld [vmem:[#allocation2 + $0xf8] sm:$0xf]
    %v152 = vld [vmem:[#allocation2 + $0xfc] sm:$0xff]
    %v153 = vld [vmem:[#allocation2 + $0x104] sm:$0xff]
    %v154 = vld [vmem:[#allocation2 + $0x10c] sm:$0xff]
    %v155 = vld [vmem:[#allocation2 + $0x114] sm:$0xf]
    %v156 = vld [vmem:[#allocation2 + $0x118] sm:$0xff]
    %v157 = vld [vmem:[#allocation2 + $0x120] sm:$0xff]
    %v158 = vld [vmem:[#allocation2 + $0x128] sm:$0xff]
    %v159 = vld [vmem:[#allocation2 + $0x130] sm:$0xf]
    %v160 = vld [vmem:[#allocation2 + $0x134] sm:$0xff]
    %v161 = vld [vmem:[#allocation2 + $0x13c] sm:$0xff]
    %v162 = vld [vmem:[#allocation2 + $0x144] sm:$0xff]
    %v163 = vld [vmem:[#allocation2 + $0x14c] sm:$0xf]
    %v164 = vld [vmem:[#allocation2 + $0x150] sm:$0xff]
    %v165 = vld [vmem:[#allocation2 + $0x158] sm:$0xff]
    %v166 = vld [vmem:[#allocation2 + $0x160] sm:$0xff]
    %v167 = vld [vmem:[#allocation2 + $0x168] sm:$0xf]
    %v168 = vld [vmem:[#allocation2 + $0x16c] sm:$0xff]
    %v169 = vld [vmem:[#allocation2 + $0x174] sm:$0xff]
    %v170 = vld [vmem:[#allocation2 + $0x17c] sm:$0xff]
    %v171 = vld [vmem:[#allocation2 + $0x184] sm:$0xf]
    %v172 = vld [vmem:[#allocation2 + $0x188] sm:$0xff]
    %v173 = vld [vmem:[#allocation2 + $0x190] sm:$0xff]
    %v174 = vld [vmem:[#allocation2 + $0x198] sm:$0xff]
    %v175 = vld [vmem:[#allocation2 + $0x1a0] sm:$0xf]
    %v176 = vld [vmem:[#allocation2 + $0x1a4] sm:$0xff]
    %v177 = vld [vmem:[#allocation2 + $0x1ac] sm:$0xff]
    %v178 = vld [vmem:[#allocation2 + $0x1b4] sm:$0xff]
    %v179 = vld [vmem:[#allocation2 + $0x1bc] sm:$0xf]
    %v180 = vld [vmem:[%s6] sm:$0xff]
    %v182 = vperm.slane %v180, 0
    %v183 = vperm.slane %v180, 1
    %v184 = vperm.slane %v180, 2
    %v185 = vperm.slane %v180, 3
    %v186 = vperm.slane %v180, 4
    %v187 = vperm.slane %v180, 5
    %v188 = vperm.slane %v180, 6
    %v260 = vunpack.c.l.b16 %v116
    %v261 = vunpack.c.h.b16 %v116
    %v262 = vunpack.c.l.b16 %v117
    %v263 = vunpack.c.h.b16 %v117
    %v264 = vunpack.c.l.b16 %v118
    %v265 = vunpack.c.h.b16 %v118
    %v266 = vunpack.c.l.b16 %v119
    %v267 = vunpack.c.l.b16 %v120
    %v268 = vunpack.c.h.b16 %v120
    %v269 = vunpack.c.l.b16 %v121
    %v270 = vunpack.c.h.b16 %v121
    %v271 = vunpack.c.l.b16 %v122
    %v272 = vunpack.c.h.b16 %v122
    %v273 = vunpack.c.l.b16 %v123
    %v274 = vunpack.c.l.b16 %v124
    %v275 = vunpack.c.h.b16 %v124
    %v276 = vunpack.c.l.b16 %v125
    %v277 = vunpack.c.h.b16 %v125
    %v278 = vunpack.c.l.b16 %v126
    %v279 = vunpack.c.h.b16 %v126
    %v280 = vunpack.c.l.b16 %v127
    %v281 = vunpack.c.l.b16 %v128
    %v282 = vunpack.c.h.b16 %v128
    %v283 = vunpack.c.l.b16 %v129
    %v284 = vunpack.c.h.b16 %v129
    %v285 = vunpack.c.l.b16 %v130
    %v286 = vunpack.c.h.b16 %v130
    %v287 = vunpack.c.l.b16 %v131
    %v288 = vunpack.c.l.b16 %v132
    %v289 = vunpack.c.h.b16 %v132
    %v290 = vunpack.c.l.b16 %v133
    %v291 = vunpack.c.h.b16 %v133
    %v292 = vunpack.c.l.b16 %v134
    %v293 = vunpack.c.h.b16 %v134
    %v294 = vunpack.c.l.b16 %v135
    %v295 = vunpack.c.l.b16 %v136
    %v296 = vunpack.c.h.b16 %v136
    %v297 = vunpack.c.l.b16 %v137
    %v298 = vunpack.c.h.b16 %v137
    %v299 = vunpack.c.l.b16 %v138
    %v300 = vunpack.c.h.b16 %v138
    %v301 = vunpack.c.l.b16 %v139
    %v302 = vunpack.c.l.b16 %v140
    %v303 = vunpack.c.h.b16 %v140
    %v304 = vunpack.c.l.b16 %v141
    %v305 = vunpack.c.h.b16 %v141
    %v306 = vunpack.c.l.b16 %v142
    %v307 = vunpack.c.h.b16 %v142
    %v308 = vunpack.c.l.b16 %v143
    %v309 = vunpack.c.l.b16 %v144
    %v310 = vunpack.c.h.b16 %v144
    %v311 = vunpack.c.l.b16 %v145
    %v312 = vunpack.c.h.b16 %v145
    %v313 = vunpack.c.l.b16 %v146
    %v314 = vunpack.c.h.b16 %v146
    %v315 = vunpack.c.l.b16 %v147
    %v316 = vunpack.c.l.b16 %v148
    %v317 = vunpack.c.h.b16 %v148
    %v318 = vunpack.c.l.b16 %v149
    %v319 = vunpack.c.h.b16 %v149
    %v320 = vunpack.c.l.b16 %v150
    %v321 = vunpack.c.h.b16 %v150
    %v322 = vunpack.c.l.b16 %v151
    %v323 = vunpack.c.l.b16 %v152
    %v324 = vunpack.c.h.b16 %v152
    %v325 = vunpack.c.l.b16 %v153
    %v326 = vunpack.c.h.b16 %v153
    %v327 = vunpack.c.l.b16 %v154
    %v328 = vunpack.c.h.b16 %v154
    %v329 = vunpack.c.l.b16 %v155
    %v330 = vunpack.c.l.b16 %v156
    %v331 = vunpack.c.h.b16 %v156
    %v332 = vunpack.c.l.b16 %v157
    %v333 = vunpack.c.h.b16 %v157
    %v334 = vunpack.c.l.b16 %v158
    %v335 = vunpack.c.h.b16 %v158
    %v336 = vunpack.c.l.b16 %v159
    %v337 = vunpack.c.l.b16 %v160
    %v338 = vunpack.c.h.b16 %v160
    %v339 = vunpack.c.l.b16 %v161
    %v340 = vunpack.c.h.b16 %v161
    %v341 = vunpack.c.l.b16 %v162
    %v342 = vunpack.c.h.b16 %v162
    %v343 = vunpack.c.l.b16 %v163
    %v344 = vunpack.c.l.b16 %v164
    %v345 = vunpack.c.h.b16 %v164
    %v346 = vunpack.c.l.b16 %v165
    %v347 = vunpack.c.h.b16 %v165
    %v348 = vunpack.c.l.b16 %v166
    %v349 = vunpack.c.h.b16 %v166
    %v350 = vunpack.c.l.b16 %v167
    %v351 = vunpack.c.l.b16 %v168
    %v352 = vunpack.c.h.b16 %v168
    %v353 = vunpack.c.l.b16 %v169
    %v354 = vunpack.c.h.b16 %v169
    %v355 = vunpack.c.l.b16 %v170
    %v356 = vunpack.c.h.b16 %v170
    %v357 = vunpack.c.l.b16 %v171
    %v358 = vunpack.c.l.b16 %v172
    %v359 = vunpack.c.h.b16 %v172
    %v360 = vunpack.c.l.b16 %v173
    %v361 = vunpack.c.h.b16 %v173
    %v362 = vunpack.c.l.b16 %v174
    %v363 = vunpack.c.h.b16 %v174
    %v364 = vunpack.c.l.b16 %v175
    %v365 = vunpack.c.l.b16 %v176
    %v366 = vunpack.c.h.b16 %v176
    %v367 = vunpack.c.l.b16 %v177
    %v368 = vunpack.c.h.b16 %v177
    %v369 = vunpack.c.l.b16 %v178
    %v370 = vunpack.c.h.b16 %v178
    %v371 = vunpack.c.l.b16 %v179
    %v372 = vpack.c.b16 %v267, %v260
    %v373 = vpack.c.b16 %v268, %v261
    %v374 = vpack.c.b16 %v269, %v262
    %v375 = vpack.c.b16 %v270, %v263
    %v376 = vpack.c.b16 %v271, %v264
    %v377 = vpack.c.b16 %v272, %v265
    %v378 = vpack.c.b16 %v273, %v266
    %v379 = vpack.c.b16 %v281, %v274
    %v380 = vpack.c.b16 %v282, %v275
    %v381 = vpack.c.b16 %v283, %v276
    %v382 = vpack.c.b16 %v284, %v277
    %v383 = vpack.c.b16 %v285, %v278
    %v384 = vpack.c.b16 %v286, %v279
    %v385 = vpack.c.b16 %v287, %v280
    %v386 = vpack.c.b16 %v295, %v288
    %v387 = vpack.c.b16 %v296, %v289
    %v388 = vpack.c.b16 %v297, %v290
    %v389 = vpack.c.b16 %v298, %v291
    %v390 = vpack.c.b16 %v299, %v292
    %v391 = vpack.c.b16 %v300, %v293
    %v392 = vpack.c.b16 %v301, %v294
    %v393 = vpack.c.b16 %v309, %v302
    %v394 = vpack.c.b16 %v310, %v303
    %v395 = vpack.c.b16 %v311, %v304
    %v396 = vpack.c.b16 %v312, %v305
    %v397 = vpack.c.b16 %v313, %v306
    %v398 = vpack.c.b16 %v314, %v307
    %v399 = vpack.c.b16 %v315, %v308
    %v400 = vpack.c.b16 %v323, %v316
    %v401 = vpack.c.b16 %v324, %v317
    %v402 = vpack.c.b16 %v325, %v318
    %v403 = vpack.c.b16 %v326, %v319
    %v404 = vpack.c.b16 %v327, %v320
    %v405 = vpack.c.b16 %v328, %v321
    %v406 = vpack.c.b16 %v329, %v322
    %v407 = vpack.c.b16 %v337, %v330
    %v408 = vpack.c.b16 %v338, %v331
    %v409 = vpack.c.b16 %v339, %v332
    %v410 = vpack.c.b16 %v340, %v333
    %v411 = vpack.c.b16 %v341, %v334
    %v412 = vpack.c.b16 %v342, %v335
    %v413 = vpack.c.b16 %v343, %v336
    %v414 = vpack.c.b16 %v351, %v344
    %v415 = vpack.c.b16 %v352, %v345
    %v416 = vpack.c.b16 %v353, %v346
    %v417 = vpack.c.b16 %v354, %v347
    %v418 = vpack.c.b16 %v355, %v348
    %v419 = vpack.c.b16 %v356, %v349
    %v420 = vpack.c.b16 %v357, %v350
    %v421 = vpack.c.b16 %v365, %v358
    %v422 = vpack.c.b16 %v366, %v359
    %v423 = vpack.c.b16 %v367, %v360
    %v424 = vpack.c.b16 %v368, %v361
    %v425 = vpack.c.b16 %v369, %v362
    %v426 = vpack.c.b16 %v370, %v363
    %v427 = vpack.c.b16 %v371, %v364
    %484 = vmatpush.bf16.msra.mxu0 %v421
    %485 = vmatpush.bf16.msra.mxu0 %v414
    %486 = vmatpush.bf16.msra.mxu0 %v407
    %487 = vmatpush.bf16.msra.mxu0 %v400
    %488 = vmatpush.bf16.msra.mxu0 %v393
    %489 = vmatpush.bf16.msra.mxu0 %v386
    %490 = vmatpush.bf16.msra.mxu0 %v379
    %491 = vmatpush.bf16.msra.mxu0 %v372
    %492 = vmatmul.bf16.gmra.mxu0 %v115
    %v493 = vpop.f32.mrf.mxu0
    %v494 = vadd.f32 %v182, %v493
    %v495 = vpop.f32.mrf.mxu0
    %496 = vdwg.mxu0
    %497 = vmatpush.bf16.msra.mxu0 %v422
    %498 = vmatpush.bf16.msra.mxu0 %v415
    %499 = vmatpush.bf16.msra.mxu0 %v408
    %500 = vmatpush.bf16.msra.mxu0 %v401
    %501 = vmatpush.bf16.msra.mxu0 %v394
    %502 = vmatpush.bf16.msra.mxu0 %v387
    %503 = vmatpush.bf16.msra.mxu0 %v380
    %504 = vmatpush.bf16.msra.mxu0 %v373
    %505 = vmatmul.bf16.gmra.mxu0 %v115
    %v506 = vpop.f32.mrf.mxu0
    %v507 = vadd.f32 %v183, %v506
    %v508 = vpop.f32.mrf.mxu0
    %509 = vdwg.mxu0
    %510 = vmatpush.bf16.msra.mxu0 %v423
    %511 = vmatpush.bf16.msra.mxu0 %v416
    %512 = vmatpush.bf16.msra.mxu0 %v409
    %513 = vmatpush.bf16.msra.mxu0 %v402
    %514 = vmatpush.bf16.msra.mxu0 %v395
    %515 = vmatpush.bf16.msra.mxu0 %v388
    %516 = vmatpush.bf16.msra.mxu0 %v381
    %517 = vmatpush.bf16.msra.mxu0 %v374
    %518 = vmatmul.bf16.gmra.mxu0 %v115
    %v519 = vpop.f32.mrf.mxu0
    %v520 = vadd.f32 %v184, %v519
    %v521 = vpop.f32.mrf.mxu0
    %522 = vdwg.mxu0
    %523 = vmatpush.bf16.msra.mxu0 %v424
    %524 = vmatpush.bf16.msra.mxu0 %v417
    %525 = vmatpush.bf16.msra.mxu0 %v410
    %526 = vmatpush.bf16.msra.mxu0 %v403
    %527 = vmatpush.bf16.msra.mxu0 %v396
    %528 = vmatpush.bf16.msra.mxu0 %v389
    %529 = vmatpush.bf16.msra.mxu0 %v382
    %530 = vmatpush.bf16.msra.mxu0 %v375
    %531 = vmatmul.bf16.gmra.mxu0 %v115
    %v532 = vpop.f32.mrf.mxu0
    %v533 = vadd.f32 %v185, %v532
    %v534 = vpop.f32.mrf.mxu0
    %535 = vdwg.mxu0
    %536 = vmatpush.bf16.msra.mxu0 %v425
    %537 = vmatpush.bf16.msra.mxu0 %v418
    %538 = vmatpush.bf16.msra.mxu0 %v411
    %539 = vmatpush.bf16.msra.mxu0 %v404
    %540 = vmatpush.bf16.msra.mxu0 %v397
    %541 = vmatpush.bf16.msra.mxu0 %v390
    %542 = vmatpush.bf16.msra.mxu0 %v383
    %543 = vmatpush.bf16.msra.mxu0 %v376
    %544 = vmatmul.bf16.gmra.mxu0 %v115
    %v545 = vpop.f32.mrf.mxu0
    %v546 = vadd.f32 %v186, %v545
    %v547 = vpop.f32.mrf.mxu0
    %548 = vdwg.mxu0
    %549 = vmatpush.bf16.msra.mxu0 %v426
    %550 = vmatpush.bf16.msra.mxu0 %v419
    %551 = vmatpush.bf16.msra.mxu0 %v412
    %552 = vmatpush.bf16.msra.mxu0 %v405
    %553 = vmatpush.bf16.msra.mxu0 %v398
    %554 = vmatpush.bf16.msra.mxu0 %v391
    %555 = vmatpush.bf16.msra.mxu0 %v384
    %556 = vmatpush.bf16.msra.mxu0 %v377
    %557 = vmatmul.bf16.gmra.mxu0 %v115
    %v558 = vpop.f32.mrf.mxu0
    %v559 = vadd.f32 %v187, %v558
    %v560 = vpop.f32.mrf.mxu0
    %561 = vdwg.mxu0
    %562 = vmatpush.bf16.msra.mxu0 %v427
    %563 = vmatpush.bf16.msra.mxu0 %v420
    %564 = vmatpush.bf16.msra.mxu0 %v413
    %565 = vmatpush.bf16.msra.mxu0 %v406
    %566 = vmatpush.bf16.msra.mxu0 %v399
    %567 = vmatpush.bf16.msra.mxu0 %v392
    %568 = vmatpush.bf16.msra.mxu0 %v385
    %569 = vmatpush.bf16.msra.mxu0 %v378
    %570 = vmatmul.bf16.gmra.mxu0 %v115
    %v571 = vpop.f32.mrf.mxu0
    %v572 = vadd.f32 %v188, %v571
    %v573 = vpop.f32.mrf.mxu0
    %574 = vdwg.mxu0
    %v575 = vxor.u32 %v494, 2147483648
    %v576 = vxor.u32 %v507, 2147483648
    %v577 = vxor.u32 %v520, 2147483648
    %v578 = vxor.u32 %v533, 2147483648
    %v579 = vxor.u32 %v546, 2147483648
    %v580 = vxor.u32 %v559, 2147483648
    %v581 = vxor.u32 %v572, 2147483648
    %v582 = vmul.f32 %v575, 1.442695
    %v583 = vpow.pop %v582
    %v584 = vmul.f32 %v576, 1.442695
    %v585 = vpow.pop %v584
    %v586 = vmul.f32 %v577, 1.442695
    %v587 = vpow.pop %v586
    %v588 = vmul.f32 %v578, 1.442695
    %v589 = vpow.pop %v588
    %v590 = vmul.f32 %v579, 1.442695
    %v591 = vpow.pop %v590
    %v592 = vmul.f32 %v580, 1.442695
    %v593 = vpow.pop %v592
    %v594 = vmul.f32 %v581, 1.442695
    %v595 = vpow.pop %v594
    %v596 = vadd.f32 %v583, 1.0
    %v597 = vadd.f32 %v585, 1.0
    %v598 = vadd.f32 %v587, 1.0
    %v599 = vadd.f32 %v589, 1.0
    %v600 = vadd.f32 %v591, 1.0
    %v601 = vadd.f32 %v593, 1.0
    %v602 = vadd.f32 %v595, 1.0
    %v603 = vrcp.pop %v596
    %v604 = vmul.f32 %v596, %v603
    %v605 = vsub.f32 1.0, %v604
    %v606 = vmul.f32 %v603, %v605
    %v607 = vadd.f32 %v603, %v606
    %vm608 = vweird.f32 %v596
    %vm609 = vweird.f32 %v603
    %vm610 = vmor %vm608, %vm609
    %v611 = vsel %vm610, %v603, %v607
    %v612 = vand.u32 2147483647, %v596
    %vm613 = vcmp.eq.f32.partialorder %v612, 8.507059e+37
    %v614 = vand.u32 %v596, 2147483648
    %v615 = vor.u32 1.1754944e-38, %v614
    %v616 = vsel %vm613, %v615, %v611
    %v617 = vmul.f32 1.0, %v616
    %v618 = vrcp.pop %v597
    %v619 = vmul.f32 %v597, %v618
    %v620 = vsub.f32 1.0, %v619
    %v621 = vmul.f32 %v618, %v620
    %v622 = vadd.f32 %v618, %v621
    %vm623 = vweird.f32 %v597
    %vm624 = vweird.f32 %v618
    %vm625 = vmor %vm623, %vm624
    %v626 = vsel %vm625, %v618, %v622
    %v627 = vand.u32 2147483647, %v597
    %vm628 = vcmp.eq.f32.partialorder %v627, 8.507059e+37
    %v629 = vand.u32 %v597, 2147483648
    %v630 = vor.u32 1.1754944e-38, %v629
    %v631 = vsel %vm628, %v630, %v626
    %v632 = vmul.f32 1.0, %v631
    %v633 = vrcp.pop %v598
    %v634 = vmul.f32 %v598, %v633
    %v635 = vsub.f32 1.0, %v634
    %v636 = vmul.f32 %v633, %v635
    %v637 = vadd.f32 %v633, %v636
    %vm638 = vweird.f32 %v598
    %vm639 = vweird.f32 %v633
    %vm640 = vmor %vm638, %vm639
    %v641 = vsel %vm640, %v633, %v637
    %v642 = vand.u32 2147483647, %v598
    %vm643 = vcmp.eq.f32.partialorder %v642, 8.507059e+37
    %v644 = vand.u32 %v598, 2147483648
    %v645 = vor.u32 1.1754944e-38, %v644
    %v646 = vsel %vm643, %v645, %v641
    %v647 = vmul.f32 1.0, %v646
    %v648 = vrcp.pop %v599
    %v649 = vmul.f32 %v599, %v648
    %v650 = vsub.f32 1.0, %v649
    %v651 = vmul.f32 %v648, %v650
    %v652 = vadd.f32 %v648, %v651
    %vm653 = vweird.f32 %v599
    %vm654 = vweird.f32 %v648
    %vm655 = vmor %vm653, %vm654
    %v656 = vsel %vm655, %v648, %v652
    %v657 = vand.u32 2147483647, %v599
    %vm658 = vcmp.eq.f32.partialorder %v657, 8.507059e+37
    %v659 = vand.u32 %v599, 2147483648
    %v660 = vor.u32 1.1754944e-38, %v659
    %v661 = vsel %vm658, %v660, %v656
    %v662 = vmul.f32 1.0, %v661
    %v663 = vrcp.pop %v600
    %v664 = vmul.f32 %v600, %v663
    %v665 = vsub.f32 1.0, %v664
    %v666 = vmul.f32 %v663, %v665
    %v667 = vadd.f32 %v663, %v666
    %vm668 = vweird.f32 %v600
    %vm669 = vweird.f32 %v663
    %vm670 = vmor %vm668, %vm669
    %v671 = vsel %vm670, %v663, %v667
    %v672 = vand.u32 2147483647, %v600
    %vm673 = vcmp.eq.f32.partialorder %v672, 8.507059e+37
    %v674 = vand.u32 %v600, 2147483648
    %v675 = vor.u32 1.1754944e-38, %v674
    %v676 = vsel %vm673, %v675, %v671
    %v677 = vmul.f32 1.0, %v676
    %v678 = vrcp.pop %v601
    %v679 = vmul.f32 %v601, %v678
    %v680 = vsub.f32 1.0, %v679
    %v681 = vmul.f32 %v678, %v680
    %v682 = vadd.f32 %v678, %v681
    %vm683 = vweird.f32 %v601
    %vm684 = vweird.f32 %v678
    %vm685 = vmor %vm683, %vm684
    %v686 = vsel %vm685, %v678, %v682
    %v687 = vand.u32 2147483647, %v601
    %vm688 = vcmp.eq.f32.partialorder %v687, 8.507059e+37
    %v689 = vand.u32 %v601, 2147483648
    %v690 = vor.u32 1.1754944e-38, %v689
    %v691 = vsel %vm688, %v690, %v686
    %v692 = vmul.f32 1.0, %v691
    %v693 = vrcp.pop %v602
    %v694 = vmul.f32 %v602, %v693
    %v695 = vsub.f32 1.0, %v694
    %v696 = vmul.f32 %v693, %v695
    %v697 = vadd.f32 %v693, %v696
    %vm698 = vweird.f32 %v602
    %vm699 = vweird.f32 %v693
    %vm700 = vmor %vm698, %vm699
    %v701 = vsel %vm700, %v693, %v697
    %v702 = vand.u32 2147483647, %v602
    %vm703 = vcmp.eq.f32.partialorder %v702, 8.507059e+37
    %v704 = vand.u32 %v602, 2147483648
    %v705 = vor.u32 1.1754944e-38, %v704
    %v706 = vsel %vm703, %v705, %v701
    %v707 = vmul.f32 1.0, %v706
    %708 = vst [vmem:[#allocation5] sm:$0xff] %v617
    %709 = vst [vmem:[#allocation5 + $0x8] sm:$0xff] %v632
    %710 = vst [vmem:[#allocation5 + $0x10] sm:$0xff] %v647
    %711 = vst [vmem:[#allocation5 + $0x18] sm:$0xff] %v662
    %712 = vst [vmem:[#allocation5 + $0x20] sm:$0xff] %v677
    %713 = vst [vmem:[#allocation5 + $0x28] sm:$0xff] %v692
    %714 = vst [vmem:[#allocation5 + $0x30] sm:$0xff] %v707
    // Predicated region
    $region34: #{tpu_custom_call.1} parent=1 // pred_check
      _
    $region35: #{tpu_custom_call.1} parent=1 // pred_check_branch
      %716 = sbr.rel (0) target = $region37
    $region36: #{tpu_custom_call.1} parent=1 // pred_region
      %718 = vsyncadd [#allocation4], 0
      %s720 = sshll.u32 [#allocation5], 4
      %s721 = int_to_ptr.vmem [resolvable:$true] %s720
      %s722 = sshll.u32 %s7, 4
      %s723 = int_to_ptr.hbm [resolvable:$true] %s722
      %725 = dma.vmem_to_hbm [thread:$0]  %s721, 896, %s723, [#allocation4]
    $region37: #{tpu_custom_call.1} parent=1 // pred_fallthru
      _
    // Predicated region
    $region38: #{tpu_custom_call.1} parent=1 // pred_check
      _
    $region39: #{tpu_custom_call.1} parent=1 // pred_check_branch
      %727 = sbr.rel (0) target = $region41
    $region40: #{tpu_custom_call.1} parent=1 // pred_region
      %729 = dma.done [#allocation4], 896
    $region41: #{tpu_custom_call.1} parent=1 // pred_fallthru
      _
    %730 = vsyncpa [#allocation3], 1
    %731 = vsyncpa [#allocation4], 1

</llo_original>
